<compile_context>
chip_gen: v7x
topology: tpu7x:2x2x1
jax: 0.10.0
libtpu: 0.0.40
codegen_flags: <defaults>
</compile_context>

<pallas_src>
import functools

import jax
import jax.numpy as jnp
import numpy as np
from jax.experimental import pallas as pl
from jax.experimental.pallas import tpu as pltpu


def _gp_head_kernel(x_ref, w_ref, b_ref, cos_ref, sin_ref, mask_ref, out_ref,
                    *, inner_dim, seq_len, rope):
    """One (batch, head) grid step: dense proj + RoPE + q@k^T + fused masking.

    x_ref    : [S, H]    hidden states for this batch element (bf16 or f32)
    w_ref    : [H, 2D]   this head's dense weight slice       (bf16 or f32)
    b_ref    : [1, 2D]   this head's dense bias               (f32)
    cos_ref  : [S, 2D]   [cos*scale || cos]  (1/sqrt(D) folded into q half)
    sin_ref  : [S, 2D]   [sin*scale || sin]
    mask_ref : [1, S]    attention mask over keys/columns     (f32)
    out_ref  : [S, S]    logits for this (batch, head)        (f32)
    """
    S, D = seq_len, inner_dim
    scale = 1.0 / float(D) ** 0.5
    neg = -1.0e12 * scale              # mask constants carry the folded scale
    mx_dt = w_ref.dtype                # MXU operand dtype (bf16 fast path)

    # Dense projection for this head on the MXU, f32 accumulation: [S, 2D].
    proj = jnp.dot(x_ref[...], w_ref[...],
                   preferred_element_type=jnp.float32) + b_ref[...]

    if rope:
        # Pair swap q2[2i] = -q[2i+1], q2[2i+1] = q[2i], done with two XLU
        # lane rolls + a parity select.  Even lanes look one lane right, odd
        # lanes one lane left, so the q-half and k-half never mix and the
        # circular wrap-around element is never selected.
        lane = jax.lax.broadcasted_iota(jnp.int32, (S, 2 * D), 1)
        nxt = pltpu.roll(proj, shift=2 * D - 1, axis=1)   # nxt[j] = proj[j+1]
        prv = pltpu.roll(proj, shift=1, axis=1)           # prv[j] = proj[j-1]
        rot = jnp.where((lane & 1) == 0, -nxt, prv)
        proj = proj * cos_ref[...] + rot * sin_ref[...]   # q half pre-scaled
        q = proj[:, :D]
        k = proj[:, D:]
    else:
        q = proj[:, :D] * scale
        k = proj[:, D:]

    # q @ k^T on the MXU (bf16 operands on the fast path, f32 accumulation).
    logits = jax.lax.dot_general(q.astype(mx_dt), k.astype(mx_dt),
                                 (((1,), (1,)), ((), ())),
                                 preferred_element_type=jnp.float32)

    # Fused epilogue: one FMA with the column mask + additive pad/tril bias.
    col_mask = mask_ref[...]                                   # [1, S]
    row = jax.lax.broadcasted_iota(jnp.int32, (S, S), 0)
    col = jax.lax.broadcasted_iota(jnp.int32, (S, S), 1)
    bias = jnp.where(row > col, neg, 0.0) + (1.0 - col_mask) * neg
    out_ref[...] = logits * col_mask + bias


def bert_global_pointer_head(last_hidden_state, attention_mask, w, b, *,
                             entity_num, inner_dim, rope=True,
                             matmul_dtype=jnp.bfloat16):
    """Post-BERT GlobalPointer head.  Returns logits of shape [B, E*S*S]."""
    B, S, H = last_hidden_state.shape
    D, E = inner_dim, entity_num
    scale = 1.0 / float(D) ** 0.5

    # Per-head weight layout [E, H, 2D] so each head's q||k slice is a
    # contiguous, lane-dense MXU operand; bias [E, 1, 2D].
    w_heads = jnp.transpose(w.reshape(H, E, 2 * D), (1, 0, 2)).astype(matmul_dtype)
    b_heads = b.reshape(E, 1, 2 * D).astype(jnp.float32)
    x = last_hidden_state.astype(matmul_dtype)

    # Sinusoidal tables (repeat-interleaved), duplicated for the q||k halves.
    # The 1/sqrt(D) logit scale is folded into the q half only.
    pos = jnp.arange(S, dtype=jnp.float32)[:, None]
    idx = jnp.arange(D // 2, dtype=jnp.float32)
    theta = jnp.power(10000.0, -2.0 * idx / D)
    ang = pos * theta                                         # [S, D/2]
    cos = jnp.repeat(jnp.cos(ang), 2, axis=-1)                # [S, D]
    sin = jnp.repeat(jnp.sin(ang), 2, axis=-1)                # [S, D]
    cos2 = jnp.concatenate([cos * scale, cos], axis=-1)       # [S, 2D]
    sin2 = jnp.concatenate([sin * scale, sin], axis=-1)       # [S, 2D]

    mask2d = attention_mask.astype(jnp.float32).reshape(B, 1, S)

    kernel = functools.partial(_gp_head_kernel, inner_dim=D, seq_len=S,
                               rope=rope)

    out = pl.pallas_call(
        kernel,
        # TODO(synk): emit bf16 logits here if the downstream loss tolerates
        # it (halves the output write-back, the actual roofline bound).
        out_shape=jax.ShapeDtypeStruct((B, E, S, S), jnp.float32),
        grid_spec=pltpu.PrefetchScalarGridSpec(
            num_scalar_prefetch=0,
            grid=(B, E),
            in_specs=[
                pl.BlockSpec((None, S, H), lambda bi, e: (bi, 0, 0)),      # x
                pl.BlockSpec((None, H, 2 * D), lambda bi, e: (e, 0, 0)),   # W
                pl.BlockSpec((None, 1, 2 * D), lambda bi, e: (e, 0, 0)),   # b
                pl.BlockSpec((S, 2 * D), lambda bi, e: (0, 0)),            # cos
                pl.BlockSpec((S, 2 * D), lambda bi, e: (0, 0)),            # sin
                pl.BlockSpec((None, 1, S), lambda bi, e: (bi, 0, 0)),      # mask
            ],
            out_specs=pl.BlockSpec((None, None, S, S),
                                   lambda bi, e: (bi, e, 0, 0)),
        ),
        compiler_params=pltpu.CompilerParams(
            dimension_semantics=("parallel", "parallel")),
    )(x, w_heads, b_heads, cos2, sin2, mask2d)

    return out.reshape(B, -1)


def _reference(last_hidden_state, attention_mask, w, b, entity_num, inner_dim,
               rope=True, matmul_dtype=jnp.float32):
    """Pure-JAX transliteration of the PyTorch forward (post-BERT).

    With matmul_dtype=bfloat16 the matmul operands are rounded at the same
    points as the kernel's fast path (accumulation stays f32)."""
    B, S, H = last_hidden_state.shape
    D, E = inner_dim, entity_num
    prec = jax.lax.Precision.HIGHEST if matmul_dtype == jnp.float32 else None
    outputs = jnp.dot(last_hidden_state.astype(matmul_dtype),
                      w.astype(matmul_dtype),
                      preferred_element_type=jnp.float32,
                      precision=prec) + b                     # [B, S, E*2D]
    outputs = outputs.reshape(B, S, E, 2 * D)
    qw, kw = outputs[..., :D], outputs[..., D:]
    if rope:
        pos = jnp.arange(S, dtype=jnp.float32)[:, None]
        idx = jnp.arange(D // 2, dtype=jnp.float32)
        theta = jnp.power(10000.0, -2.0 * idx / D)
        ang = pos * theta
        cos_pos = jnp.repeat(jnp.cos(ang), 2, axis=-1)[None, :, None, :]
        sin_pos = jnp.repeat(jnp.sin(ang), 2, axis=-1)[None, :, None, :]

        def rot(x):
            x2 = jnp.stack([-x[..., 1::2], x[..., 0::2]], axis=-1).reshape(x.shape)
            return x * cos_pos + x2 * sin_pos

        qw, kw = rot(qw), rot(kw)
    logits = jnp.einsum('bmhd,bnhd->bhmn',
                        qw.astype(matmul_dtype), kw.astype(matmul_dtype),
                        preferred_element_type=jnp.float32, precision=prec)
    pad = attention_mask.astype(jnp.float32)[:, None, None, :]
    logits = logits * pad - (1.0 - pad) * 1e12
    r = jnp.arange(S)[:, None]
    c = jnp.arange(S)[None, :]
    tril = (r > c).astype(jnp.float32)
    logits = logits - tril * 1e12
    logits = logits / (D ** 0.5)
    return logits.reshape(B, -1)


if __name__ == "__main__":
    # Small but TPU-representative shapes: S a multiple of 128 (lane-dense,
    # unmasked output stores) and D = 64 so each head's q||k slab is 128 lanes.
    B, S, H, E, D = 2, 128, 128, 4, 64

    key = jax.random.PRNGKey(0)
    k1, k2, k3 = jax.random.split(key, 3)

    # Synthetic BERT output (stands in for self.bert(...)[0]).
    last_hidden_state = jax.random.normal(k1, (B, S, H), jnp.float32)
    # Dense-layer params (shapes from nn.Linear(H, E*D*2), x @ W convention).
    w = jax.random.normal(k2, (H, E * 2 * D), jnp.float32) * (1.0 / np.sqrt(H))
    b = jax.random.normal(k3, (E * 2 * D,), jnp.float32) * 0.02
    # Attention mask: batch 0 fully valid, batch 1 has 40 padded positions.
    attention_mask = jnp.concatenate(
        [jnp.ones((1, S), jnp.float32),
         jnp.concatenate([jnp.ones((1, S - 40), jnp.float32),
                          jnp.zeros((1, 40), jnp.float32)], axis=1)], axis=0)

    # Fast path: bf16 MXU operands, f32 accumulation (the default).
    out_bf16 = jax.block_until_ready(
        bert_global_pointer_head(last_hidden_state, attention_mask, w, b,
                                 entity_num=E, inner_dim=D, rope=True,
                                 matmul_dtype=jnp.bfloat16))
    assert out_bf16.shape == (B, E * S * S)

    # (1) Exact-logic check: fp32 kernel path vs fp32 reference.
    out_f32 = jax.block_until_ready(
        bert_global_pointer_head(last_hidden_state, attention_mask, w, b,
                                 entity_num=E, inner_dim=D, rope=True,
                                 matmul_dtype=jnp.float32))
    ref_f32 = _reference(last_hidden_state, attention_mask, w, b, E, D,
                         rope=True, matmul_dtype=jnp.float32)
    np.testing.assert_allclose(np.asarray(out_f32), np.asarray(ref_f32),
                               rtol=2e-3, atol=1e-3)

    # (2) bf16 fast path vs a reference with identical operand rounding
    #     (slightly larger atol absorbs rare one-ulp bf16 rounding flips).
    ref_bf16 = _reference(last_hidden_state, attention_mask, w, b, E, D,
                          rope=True, matmul_dtype=jnp.bfloat16)
    np.testing.assert_allclose(np.asarray(out_bf16), np.asarray(ref_bf16),
                               rtol=2e-3, atol=5e-3)

    # (3) bf16 fast path vs the true fp32 spec (bf16-level tolerance).
    np.testing.assert_allclose(np.asarray(out_bf16), np.asarray(ref_f32),
                               rtol=5e-2, atol=1e-1)

    # (4) rope=False branch sanity check (fp32).
    out_nr = jax.block_until_ready(
        bert_global_pointer_head(last_hidden_state, attention_mask, w, b,
                                 entity_num=E, inner_dim=D, rope=False,
                                 matmul_dtype=jnp.float32))
    ref_nr = _reference(last_hidden_state, attention_mask, w, b, E, D,
                        rope=False, matmul_dtype=jnp.float32)
    np.testing.assert_allclose(np.asarray(out_nr), np.asarray(ref_nr),
                               rtol=2e-3, atol=1e-3)

    print("KERNEL_OK")
</pallas_src>

<mosaic_0001>
module attributes {stable_mosaic.version = 11 : i64} {
  func.func @_gp_head_kernel(%arg0: i32, %arg1: i32, %arg2: memref<1x128x128xbf16, #tpu.memory_space<vmem>>, %arg3: memref<1x128x128xbf16, #tpu.memory_space<vmem>>, %arg4: memref<1x1x128xf32, #tpu.memory_space<vmem>>, %arg5: memref<128x128xf32, #tpu.memory_space<vmem>>, %arg6: memref<128x128xf32, #tpu.memory_space<vmem>>, %arg7: memref<1x1x128xf32, #tpu.memory_space<vmem>>, %arg8: memref<1x1x128x128xf32, #tpu.memory_space<vmem>>) attributes {dimension_semantics = [#tpu.dimension_semantics<parallel>, #tpu.dimension_semantics<parallel>], iteration_bounds = array<i64: 2, 4>, scalar_prefetch = 0 : i64, scratch_operands = 0 : i64, tpu.core_type = #tpu.core_type<tc>, window_params = [{transform_indices = @transform_0, window_bounds = array<i64: 1, 128, 128>}, {transform_indices = @transform_1, window_bounds = array<i64: 1, 128, 128>}, {transform_indices = @transform_2, window_bounds = array<i64: 1, 1, 128>}, {pipeline_mode = #tpu.pipeline_mode<synchronous>, transform_indices = @transform_3, window_bounds = array<i64: 128, 128>}, {pipeline_mode = #tpu.pipeline_mode<synchronous>, transform_indices = @transform_4, window_bounds = array<i64: 128, 128>}, {transform_indices = @transform_5, window_bounds = array<i64: 1, 1, 128>}, {transform_indices = @transform_6, window_bounds = array<i64: 1, 1, 128, 128>}]} {
    %c0 = arith.constant 0 : index
    %c0_0 = arith.constant 0 : index
    %c0_1 = arith.constant 0 : index
    %0 = vector.load %arg2[%c0, %c0_0, %c0_1] : memref<1x128x128xbf16, #tpu.memory_space<vmem>>, vector<1x128x128xbf16>
    %1 = vector.shape_cast %0 : vector<1x128x128xbf16> to vector<128x128xbf16>
    %c0_2 = arith.constant 0 : index
    %c0_3 = arith.constant 0 : index
    %c0_4 = arith.constant 0 : index
    %2 = vector.load %arg3[%c0_2, %c0_3, %c0_4] : memref<1x128x128xbf16, #tpu.memory_space<vmem>>, vector<1x128x128xbf16>
    %3 = vector.shape_cast %2 : vector<1x128x128xbf16> to vector<128x128xbf16>
    %cst = arith.constant dense<0.000000e+00> : vector<128x128xf32>
    %4 = tpu.matmul %1, %3, %cst {dimension_numbers = #tpu.dot_dimension_numbers<[1], [0], [0], [1], [0, 0, 1, 1], [], []>} : vector<128x128xbf16>, vector<128x128xbf16>, vector<128x128xf32> -> vector<128x128xf32>
    %c0_5 = arith.constant 0 : index
    %c0_6 = arith.constant 0 : index
    %c0_7 = arith.constant 0 : index
    %5 = vector.load %arg4[%c0_5, %c0_6, %c0_7] : memref<1x1x128xf32, #tpu.memory_space<vmem>>, vector<1x1x128xf32>
    %6 = vector.shape_cast %5 : vector<1x1x128xf32> to vector<1x128xf32>
    %7 = vector.broadcast %6 : vector<1x128xf32> to vector<128x128xf32>
    %8 = arith.addf %4, %7 : vector<128x128xf32>
    %9 = tpu.iota {dimensions = array<i32: 1>} : vector<128x128xi32>
    %c127_i32 = arith.constant 127 : i32
    %10 = tpu.dynamic_rotate %8 by %c127_i32 dim 1 : vector<128x128xf32>, i32 -> vector<128x128xf32>
    %c1_i32 = arith.constant 1 : i32
    %11 = tpu.dynamic_rotate %8 by %c1_i32 dim 1 : vector<128x128xf32>, i32 -> vector<128x128xf32>
    %c1_i32_8 = arith.constant 1 : i32
    %12 = vector.broadcast %c1_i32_8 : i32 to vector<128x128xi32>
    %13 = arith.andi %9, %12 : vector<128x128xi32>
    %c0_i32 = arith.constant 0 : i32
    %14 = vector.broadcast %c0_i32 : i32 to vector<128x128xi32>
    %15 = arith.cmpi eq, %13, %14 : vector<128x128xi32>
    %cst_9 = arith.constant 0.000000e+00 : f32
    %16 = vector.broadcast %cst_9 : f32 to vector<128x128xf32>
    %17 = arith.subf %16, %10 : vector<128x128xf32>
    %18 = arith.select %15, %17, %11 : vector<128x128xi1>, vector<128x128xf32>
    %c0_10 = arith.constant 0 : index
    %c0_11 = arith.constant 0 : index
    %19 = vector.load %arg5[%c0_10, %c0_11] : memref<128x128xf32, #tpu.memory_space<vmem>>, vector<128x128xf32>
    %20 = arith.mulf %8, %19 : vector<128x128xf32>
    %c0_12 = arith.constant 0 : index
    %c0_13 = arith.constant 0 : index
    %21 = vector.load %arg6[%c0_12, %c0_13] : memref<128x128xf32, #tpu.memory_space<vmem>>, vector<128x128xf32>
    %22 = arith.mulf %18, %21 : vector<128x128xf32>
    %23 = arith.addf %20, %22 : vector<128x128xf32>
    %24 = vector.extract_strided_slice %23 {offsets = [0, 0], sizes = [128, 64], strides = [1, 1]} : vector<128x128xf32> to vector<128x64xf32>
    %25 = vector.extract_strided_slice %23 {offsets = [0, 64], sizes = [128, 64], strides = [1, 1]} : vector<128x128xf32> to vector<128x64xf32>
    %26 = arith.truncf %24 : vector<128x64xf32> to vector<128x64xbf16>
    %27 = arith.truncf %25 : vector<128x64xf32> to vector<128x64xbf16>
    %cst_14 = arith.constant dense<0.000000e+00> : vector<128x128xf32>
    %28 = tpu.matmul %26, %27, %cst_14 {dimension_numbers = #tpu.dot_dimension_numbers<[1], [1], [0], [0], [0, 0, 1, 0], [], []>} : vector<128x64xbf16>, vector<128x64xbf16>, vector<128x128xf32> -> vector<128x128xf32>
    %c0_15 = arith.constant 0 : index
    %c0_16 = arith.constant 0 : index
    %c0_17 = arith.constant 0 : index
    %29 = vector.load %arg7[%c0_15, %c0_16, %c0_17] : memref<1x1x128xf32, #tpu.memory_space<vmem>>, vector<1x1x128xf32>
    %30 = vector.shape_cast %29 : vector<1x1x128xf32> to vector<1x128xf32>
    %31 = tpu.iota {dimensions = array<i32: 0>} : vector<128x128xi32>
    %32 = tpu.iota {dimensions = array<i32: 1>} : vector<128x128xi32>
    %33 = arith.cmpi sgt, %31, %32 : vector<128x128xi32>
    %cst_18 = arith.constant -1.250000e+11 : f32
    %cst_19 = arith.constant 0.000000e+00 : f32
    %34 = vector.broadcast %cst_18 : f32 to vector<128x128xf32>
    %35 = vector.broadcast %cst_19 : f32 to vector<128x128xf32>
    %36 = arith.select %33, %34, %35 : vector<128x128xi1>, vector<128x128xf32>
    %cst_20 = arith.constant 1.000000e+00 : f32
    %37 = vector.broadcast %cst_20 : f32 to vector<1x128xf32>
    %38 = arith.subf %37, %30 : vector<1x128xf32>
    %cst_21 = arith.constant -1.250000e+11 : f32
    %39 = vector.broadcast %cst_21 : f32 to vector<1x128xf32>
    %40 = arith.mulf %38, %39 : vector<1x128xf32>
    %41 = vector.broadcast %40 : vector<1x128xf32> to vector<128x128xf32>
    %42 = arith.addf %36, %41 : vector<128x128xf32>
    %43 = vector.broadcast %30 : vector<1x128xf32> to vector<128x128xf32>
    %44 = arith.mulf %28, %43 : vector<128x128xf32>
    %45 = arith.addf %44, %42 : vector<128x128xf32>
    %c0_22 = arith.constant 0 : index
    %c0_23 = arith.constant 0 : index
    %c0_24 = arith.constant 0 : index
    %c0_25 = arith.constant 0 : index
    %46 = vector.load %arg8[%c0_22, %c0_23, %c0_24, %c0_25] : memref<1x1x128x128xf32, #tpu.memory_space<vmem>>, vector<1x1x128x128xf32>
    %47 = vector.shape_cast %46 : vector<1x1x128x128xf32> to vector<128x128xf32>
    %48 = vector.shape_cast %45 : vector<128x128xf32> to vector<1x1x128x128xf32>
    tpu.vector_store %arg8[%c0_22, %c0_23, %c0_24, %c0_25], %48 {strides = array<i32>} : memref<1x1x128x128xf32, #tpu.memory_space<vmem>>, vector<1x1x128x128xf32>,
    return
  }
  func.func @transform_0(%arg0: i32, %arg1: i32) -> (i32, i32, i32) {
    %c0_i32 = arith.constant 0 : i32
    %c0_i32_0 = arith.constant 0 : i32
    %c0_i32_1 = arith.constant 0 : i32
    return %arg0, %c0_i32, %c0_i32_0 : i32, i32, i32
  }
  func.func @transform_1(%arg0: i32, %arg1: i32) -> (i32, i32, i32) {
    %c0_i32 = arith.constant 0 : i32
    %c0_i32_0 = arith.constant 0 : i32
    %c0_i32_1 = arith.constant 0 : i32
    return %arg1, %c0_i32, %c0_i32_0 : i32, i32, i32
  }
  func.func @transform_2(%arg0: i32, %arg1: i32) -> (i32, i32, i32) {
    %c0_i32 = arith.constant 0 : i32
    %c0_i32_0 = arith.constant 0 : i32
    %c0_i32_1 = arith.constant 0 : i32
    return %arg1, %c0_i32, %c0_i32_0 : i32, i32, i32
  }
  func.func @transform_3(%arg0: i32, %arg1: i32) -> (i32, i32) {
    %c0_i32 = arith.constant 0 : i32
    %c0_i32_0 = arith.constant 0 : i32
    %c0_i32_1 = arith.constant 0 : i32
    return %c0_i32, %c0_i32_0 : i32, i32
  }
  func.func @transform_4(%arg0: i32, %arg1: i32) -> (i32, i32) {
    %c0_i32 = arith.constant 0 : i32
    %c0_i32_0 = arith.constant 0 : i32
    %c0_i32_1 = arith.constant 0 : i32
    return %c0_i32, %c0_i32_0 : i32, i32
  }
  func.func @transform_5(%arg0: i32, %arg1: i32) -> (i32, i32, i32) {
    %c0_i32 = arith.constant 0 : i32
    %c0_i32_0 = arith.constant 0 : i32
    %c0_i32_1 = arith.constant 0 : i32
    return %arg0, %c0_i32, %c0_i32_0 : i32, i32, i32
  }
  func.func @transform_6(%arg0: i32, %arg1: i32) -> (i32, i32, i32, i32) {
    %c0_i32 = arith.constant 0 : i32
    %c0_i32_0 = arith.constant 0 : i32
    %c0_i32_1 = arith.constant 0 : i32
    return %arg0, %arg1, %c0_i32, %c0_i32_0 : i32, i32, i32, i32
  }
}

</mosaic_0001>

<llo_original>
// kernel: tpu_custom_call.1
$region0: #{tpu_custom_call.1}
  #allocation0 [shape = 'u32[]', space=smem, size = 0x4, offset = 0x4, fixed_abs, tag = 'smem constant byte address 0x4 - core index']
  #allocation1 [shape = 'u32[144,128]{1,0:T(1,128)}', space=vmem, size = 0x12000, scoped, tag = 'internal scratch']
  %s0 = inlined_call_operand.hbm [shape: bf16[2,128,128], index: 0, kind: input, shape index: {}]
  %s1 = inlined_call_operand.hbm [shape: bf16[4,128,128], index: 1, kind: input, shape index: {}]
  %s2 = inlined_call_operand.vmem [shape: f32[4,1,128], index: 2, kind: input, shape index: {}]
  %s3 = inlined_call_operand.hbm [shape: f32[128,128], index: 3, kind: input, shape index: {}]
  %s4 = inlined_call_operand.hbm [shape: f32[128,128], index: 4, kind: input, shape index: {}]
  %s5 = inlined_call_operand.vmem [shape: f32[2,1,128], index: 5, kind: input, shape index: {}]
  %s6 = inlined_call_operand.hbm [shape: f32[2,4,128,128], index: 6, kind: output, shape index: {}]
  %s7 = sld [smem:[#allocation0]]
  $region73: #{tpu_custom_call.1} parent=0
    _
  %s9 = ssub.s32 1, %s7
  %s10 = scalar_select 0, %s9, %s7
  $region1: #{tpu_custom_call.1} parent=0
    #allocation2 [shape = 'u8[65536]{0}', space=vmem, size = 0x10000, scoped, tag = 'input window, operand 0']
    #allocation3 [shape = 's32[2]{0}', space=sflag, size = 0x8, scoped, tag = 'scoped memory for tpu_custom_call.1']
    #allocation4 [shape = 's32[2]{0}', space=sflag, size = 0x8, scoped, tag = 'scoped memory for tpu_custom_call.1']
    #allocation5 [shape = 'u8[65536]{0}', space=vmem, size = 0x10000, scoped, tag = 'input window, operand 1']
    #allocation6 [shape = 's32[2]{0}', space=sflag, size = 0x8, scoped, tag = 'scoped memory for tpu_custom_call.1']
    #allocation7 [shape = 'u8[65536]{0}', space=vmem, size = 0x10000, scoped, tag = 'input window, operand 3, single buffered']
    #allocation8 [shape = 'u8[65536]{0}', space=vmem, size = 0x10000, scoped, tag = 'input window, operand 4, single buffered']
    #allocation9 [shape = 's32[1]{0}', space=sflag, size = 0x4, scoped, tag = 'scoped memory for tpu_custom_call.1']
    #allocation10 [shape = 'u8[131072]{0}', space=vmem, size = 0x20000, scoped, tag = 'output window, operand 0']
    %11 = vsyncpa [#allocation3], 0
    %s12 = scalar_lea.sflag [#allocation3], 1
    %13 = vsyncpa %s12, 0
    %14 = vsyncpa [#allocation6], 0
    %s15 = scalar_lea.sflag [#allocation6], 1
    %16 = vsyncpa %s15, 0
    %17 = vsyncpa [#allocation9], 0
    %18 = vsyncpa [#allocation4], 0
    %s19 = scalar_lea.sflag [#allocation4], 1
    %20 = vsyncpa %s19, 0
    loop: start=0, step=1, limit=10
    $region2: #{tpu_custom_call.1} parent=1 // loop_pre_header
      _
    $region3: #{tpu_custom_call.1} parent=1 // loop_header
      %s22 = sphi 0, %s26
      %p23 = scmp.ge.s32.totalorder %s22, 10
      %s29 = sphi 0, %s41
      %s30 = sphi 0, %s37
      %s31 = sphi 0, %s29
      %s32 = sphi 0, %s30
      %s33 = sphi 0, %s31
      %s34 = sphi 0, %s32
      %s44 = sphi 0, %s46
      %s47 = sphi 0, %s44
      %s48 = sphi 0, %s47
      %s64 = sphi 0, %s48
      %s70 = sphi 0, %s72
      %s73 = sphi 0, %s70
      %s74 = sphi 0, %s73
      %s90 = sphi 0, %s74
      %s96 = sphi 0, %s98
      %s99 = sphi 0, %s96
      %s100 = sphi 0, %s99
      %s116 = sphi 0, %s100
      %s120 = sphi 0, %s120
      %s122 = sphi 0, %s120
      %s123 = sphi 0, %s122
      %s137 = sphi 0, %s123
      %s141 = sphi 0, %s141
      %s143 = sphi 0, %s141
      %s144 = sphi 0, %s143
      %s158 = sphi 0, %s144
      %s164 = sphi 0, %s166
      %s167 = sphi 0, %s164
      %s168 = sphi 0, %s167
      %s184 = sphi 0, %s168
      %s192 = sphi 0, %s194
      %s195 = sphi 0, %s192
      %s196 = sphi 0, %s195
      %s212 = sphi 0, %s196
    $region4: #{tpu_custom_call.1} parent=1 // loop_header_branch
      %25 = sbr.rel (%p23) target = $region8
    $region5: #{tpu_custom_call.1} parent=1 // loop_body
      %s27 = ssub.s32 %s22, 1
      %s28 = ssub.s32 %s22, 2
      %s35 = sadd.s32 1, %s30
      %p36 = scmp.ge.s32.totalorder %s35, 4
      %s37 = scalar_select %p36, 0, %s35
      %s38 = sadd.s32 1, %s29
      %s39 = scalar_select %p36, %s38, %s29
      %p40 = scmp.ge.s32.totalorder %s39, 2
      %s41 = scalar_select %p40, 0, %s39
      %s42 = ssub.s32 %s29, %s41
      %p43 = scmp.eq.s32.totalorder %s42, 0
      %s45 = sadd.s32 %s44, 1
      %s46 = scalar_select %p43, %s44, %s45
      %p49 = pneg %p43
      %p50 = scmp.eq.s32.totalorder %s22, 7
      %p51 = por %p49, %p50
      %p52 = scmp.ne.s32.totalorder %s44, %s47
      %p53 = scmp.eq.s32.totalorder %s22, 0
      %p54 = por %p52, %p53
      %p55 = scmp.ne.s32.totalorder %s44, %s47
      %p56 = scmp.eq.s32.totalorder %s27, 7
      %p57 = por %p55, %p56
      %p58 = scmp.ne.s32.totalorder %s47, %s48
      %p59 = scmp.eq.s32.totalorder %s27, 0
      %p60 = por %p58, %p59
      %p61 = scmp.ne.s32.totalorder %s47, %s48
      %p62 = scmp.eq.s32.totalorder %s28, 7
      %p63 = por %p61, %p62
      %p65 = scmp.ne.s32.totalorder %s48, %s64
      %p66 = scmp.eq.s32.totalorder %s28, 0
      %p67 = por %p65, %p66
      %s68 = ssub.s32 %s30, %s37
      %p69 = scmp.eq.s32.totalorder %s68, 0
      %s71 = sadd.s32 %s70, 1
      %s72 = scalar_select %p69, %s70, %s71
      %p75 = pneg %p69
      %p76 = scmp.eq.s32.totalorder %s22, 7
      %p77 = por %p75, %p76
      %p78 = scmp.ne.s32.totalorder %s70, %s73
      %p79 = scmp.eq.s32.totalorder %s22, 0
      %p80 = por %p78, %p79
      %p81 = scmp.ne.s32.totalorder %s70, %s73
      %p82 = scmp.eq.s32.totalorder %s27, 7
      %p83 = por %p81, %p82
      %p84 = scmp.ne.s32.totalorder %s73, %s74
      %p85 = scmp.eq.s32.totalorder %s27, 0
      %p86 = por %p84, %p85
      %p87 = scmp.ne.s32.totalorder %s73, %s74
      %p88 = scmp.eq.s32.totalorder %s28, 7
      %p89 = por %p87, %p88
      %p91 = scmp.ne.s32.totalorder %s74, %s90
      %p92 = scmp.eq.s32.totalorder %s28, 0
      %p93 = por %p91, %p92
      %s94 = ssub.s32 %s30, %s37
      %p95 = scmp.eq.s32.totalorder %s94, 0
      %s97 = sadd.s32 %s96, 1
      %s98 = scalar_select %p95, %s96, %s97
      %p101 = pneg %p95
      %p102 = scmp.eq.s32.totalorder %s22, 7
      %p103 = por %p101, %p102
      %p104 = scmp.ne.s32.totalorder %s96, %s99
      %p105 = scmp.eq.s32.totalorder %s22, 0
      %p106 = por %p104, %p105
      %p107 = scmp.ne.s32.totalorder %s96, %s99
      %p108 = scmp.eq.s32.totalorder %s27, 7
      %p109 = por %p107, %p108
      %p110 = scmp.ne.s32.totalorder %s99, %s100
      %p111 = scmp.eq.s32.totalorder %s27, 0
      %p112 = por %p110, %p111
      %p113 = scmp.ne.s32.totalorder %s99, %s100
      %p114 = scmp.eq.s32.totalorder %s28, 7
      %p115 = por %p113, %p114
      %p117 = scmp.ne.s32.totalorder %s100, %s116
      %p118 = scmp.eq.s32.totalorder %s28, 0
      %p119 = por %p117, %p118
      %s121 = sadd.s32 %s120, 1
      %p124 = scmp.eq.s32.totalorder %s22, 7
      %p125 = scmp.ne.s32.totalorder %s120, %s122
      %p126 = scmp.eq.s32.totalorder %s22, 0
      %p127 = por %p125, %p126
      %p128 = scmp.ne.s32.totalorder %s120, %s122
      %p129 = scmp.eq.s32.totalorder %s27, 7
      %p130 = por %p128, %p129
      %p131 = scmp.ne.s32.totalorder %s122, %s123
      %p132 = scmp.eq.s32.totalorder %s27, 0
      %p133 = por %p131, %p132
      %p134 = scmp.ne.s32.totalorder %s122, %s123
      %p135 = scmp.eq.s32.totalorder %s28, 7
      %p136 = por %p134, %p135
      %p138 = scmp.ne.s32.totalorder %s123, %s137
      %p139 = scmp.eq.s32.totalorder %s28, 0
      %p140 = por %p138, %p139
      %s142 = sadd.s32 %s141, 1
      %p145 = scmp.eq.s32.totalorder %s22, 7
      %p146 = scmp.ne.s32.totalorder %s141, %s143
      %p147 = scmp.eq.s32.totalorder %s22, 0
      %p148 = por %p146, %p147
      %p149 = scmp.ne.s32.totalorder %s141, %s143
      %p150 = scmp.eq.s32.totalorder %s27, 7
      %p151 = por %p149, %p150
      %p152 = scmp.ne.s32.totalorder %s143, %s144
      %p153 = scmp.eq.s32.totalorder %s27, 0
      %p154 = por %p152, %p153
      %p155 = scmp.ne.s32.totalorder %s143, %s144
      %p156 = scmp.eq.s32.totalorder %s28, 7
      %p157 = por %p155, %p156
      %p159 = scmp.ne.s32.totalorder %s144, %s158
      %p160 = scmp.eq.s32.totalorder %s28, 0
      %p161 = por %p159, %p160
      %s162 = ssub.s32 %s29, %s41
      %p163 = scmp.eq.s32.totalorder %s162, 0
      %s165 = sadd.s32 %s164, 1
      %s166 = scalar_select %p163, %s164, %s165
      %p169 = pneg %p163
      %p170 = scmp.eq.s32.totalorder %s22, 7
      %p171 = por %p169, %p170
      %p172 = scmp.ne.s32.totalorder %s164, %s167
      %p173 = scmp.eq.s32.totalorder %s22, 0
      %p174 = por %p172, %p173
      %p175 = scmp.ne.s32.totalorder %s164, %s167
      %p176 = scmp.eq.s32.totalorder %s27, 7
      %p177 = por %p175, %p176
      %p178 = scmp.ne.s32.totalorder %s167, %s168
      %p179 = scmp.eq.s32.totalorder %s27, 0
      %p180 = por %p178, %p179
      %p181 = scmp.ne.s32.totalorder %s167, %s168
      %p182 = scmp.eq.s32.totalorder %s28, 7
      %p183 = por %p181, %p182
      %p185 = scmp.ne.s32.totalorder %s168, %s184
      %p186 = scmp.eq.s32.totalorder %s28, 0
      %p187 = por %p185, %p186
      %s188 = ssub.s32 %s29, %s41
      %s189 = ssub.s32 %s30, %s37
      %s190 = sor.u32 %s188, %s189
      %p191 = scmp.eq.s32.totalorder %s190, 0
      %s193 = sadd.s32 %s192, 1
      %s194 = scalar_select %p191, %s192, %s193
      %p197 = pneg %p191
      %p198 = scmp.eq.s32.totalorder %s22, 7
      %p199 = por %p197, %p198
      %p200 = scmp.ne.s32.totalorder %s192, %s195
      %p201 = scmp.eq.s32.totalorder %s22, 0
      %p202 = por %p200, %p201
      %p203 = scmp.ne.s32.totalorder %s192, %s195
      %p204 = scmp.eq.s32.totalorder %s27, 7
      %p205 = por %p203, %p204
      %p206 = scmp.ne.s32.totalorder %s195, %s196
      %p207 = scmp.eq.s32.totalorder %s27, 0
      %p208 = por %p206, %p207
      %p209 = scmp.ne.s32.totalorder %s195, %s196
      %p210 = scmp.eq.s32.totalorder %s28, 7
      %p211 = por %p209, %p210
      %p213 = scmp.ne.s32.totalorder %s196, %s212
      %p214 = scmp.eq.s32.totalorder %s28, 0
      %p215 = por %p213, %p214
      %p216 = scmp.le.s32.totalorder 1, %s22
      %p217 = scmp.lt.s32.totalorder %s22, 9
      %p218 = pnand %p216, %p217
      %p219 = pneg %p218
      // Predicated region
      $region9: #{tpu_custom_call.1} parent=5 // pred_check
        _
      $region10: #{tpu_custom_call.1} parent=5 // pred_check_branch
        %221 = sbr.rel (%p218) target = $region12
      $region11: #{tpu_custom_call.1} parent=5 // pred_region
        %s222 = ssub.s32 %s22, 1
        // Predicated region
        $region13: #{tpu_custom_call.1} parent=11 // pred_check
          %p223 = pneg %p133
        $region14: #{tpu_custom_call.1} parent=11 // pred_check_branch
          %225 = sbr.rel (%p223) target = $region16
        $region15: #{tpu_custom_call.1} parent=11 // pred_region
          %s227 = ssub.s32 2048, 2048
          %228 = vsyncadd [#allocation6], %s227
          %s229 = sshll.u32 [#allocation7], 4
          %s230 = int_to_ptr.vmem [resolvable:$true] %s229
          %235 = dma.hbm_to_vmem [thread:$0]  %s3, 2048, %s230, [#allocation6], 128, 128, 8
        $region16: #{tpu_custom_call.1} parent=11 // pred_fallthru
          _
        // Predicated region
        $region17: #{tpu_custom_call.1} parent=11 // pred_check
          %p236 = pneg %p154
        $region18: #{tpu_custom_call.1} parent=11 // pred_check_branch
          %238 = sbr.rel (%p236) target = $region20
        $region19: #{tpu_custom_call.1} parent=11 // pred_region
          %s240 = ssub.s32 2048, 2048
          %241 = vsyncadd [#allocation9], %s240
          %s242 = sshll.u32 [#allocation8], 4
          %s243 = int_to_ptr.vmem [resolvable:$true] %s242
          %248 = dma.hbm_to_vmem [thread:$0]  %s4, 2048, %s243, [#allocation9], 128, 128, 8
        $region20: #{tpu_custom_call.1} parent=11 // pred_fallthru
          _
      $region12: #{tpu_custom_call.1} parent=5 // pred_fallthru
        _
      %p249 = scmp.lt.s32.totalorder %s22, 8
      // Predicated region
      $region21: #{tpu_custom_call.1} parent=5 // pred_check
        %p250 = pneg %p249
      $region22: #{tpu_custom_call.1} parent=5 // pred_check_branch
        %252 = sbr.rel (%p250) target = $region24
      $region23: #{tpu_custom_call.1} parent=5 // pred_region
        // Predicated region
        $region25: #{tpu_custom_call.1} parent=23 // pred_check
          %p253 = pneg %p54
        $region26: #{tpu_custom_call.1} parent=23 // pred_check_branch
          %255 = sbr.rel (%p253) target = $region28
        $region27: #{tpu_custom_call.1} parent=23 // pred_region
          %s256 = sand.u32 %s44, 1
          %s257 = scalar_lea.sflag [#allocation3], %s256
          %s258 = sand.u32 %s44, 1
          %s259 = smul.addr %s258, 64
          %s260 = scalar_lea.vmem [#allocation2], %s259
          %s262 = ssub.s32 1024, 1024
          %263 = vsyncadd %s257, %s262
          %s264 = smul.addr %s29, 16
          %s265 = smul.addr %s264, 64
          %s266 = scalar_lea.hbm %s0, %s265
          %s267 = sshll.u32 %s260, 4
          %s268 = int_to_ptr.vmem [resolvable:$true] %s267
          %273 = dma.hbm_to_vmem [thread:$0]  %s266, 1024, %s268, %s257, 64, 64, 4
        $region28: #{tpu_custom_call.1} parent=23 // pred_fallthru
          _
        // Predicated region
        $region29: #{tpu_custom_call.1} parent=23 // pred_check
          %p274 = pneg %p80
        $region30: #{tpu_custom_call.1} parent=23 // pred_check_branch
          %276 = sbr.rel (%p274) target = $region32
        $region31: #{tpu_custom_call.1} parent=23 // pred_region
          %s277 = sand.u32 %s22, 1
          %s278 = scalar_lea.sflag [#allocation6], %s277
          %s279 = sand.u32 %s70, 1
          %s280 = smul.addr %s279, 64
          %s281 = scalar_lea.vmem [#allocation5], %s280
          %s283 = ssub.s32 1024, 1024
          %284 = vsyncadd %s278, %s283
          %s285 = smul.addr %s30, 16
          %s286 = smul.addr %s285, 64
          %s287 = scalar_lea.hbm %s1, %s286
          %s288 = sshll.u32 %s281, 4
          %s289 = int_to_ptr.vmem [resolvable:$true] %s288
          %294 = dma.hbm_to_vmem [thread:$0]  %s287, 1024, %s289, %s278, 64, 64, 4
        $region32: #{tpu_custom_call.1} parent=23 // pred_fallthru
          _
        // Predicated region
        $region33: #{tpu_custom_call.1} parent=23 // pred_check
          %p295 = pneg %p106
        $region34: #{tpu_custom_call.1} parent=23 // pred_check_branch
          %297 = sbr.rel (%p295) target = $region36
        $region35: #{tpu_custom_call.1} parent=23 // pred_region
          %p298 = scmp.lt.s32.totalorder %s30, 3
          %s299 = scalar_select %p298, %s30, 3
          %s300 = scalar_lea.vmem %s2, %s299
        $region36: #{tpu_custom_call.1} parent=23 // pred_fallthru
          _
        // Predicated region
        $region37: #{tpu_custom_call.1} parent=23 // pred_check
          %p301 = pneg %p174
        $region38: #{tpu_custom_call.1} parent=23 // pred_check_branch
          %303 = sbr.rel (%p301) target = $region40
        $region39: #{tpu_custom_call.1} parent=23 // pred_region
          %p304 = scmp.lt.s32.totalorder %s29, 1
          %s305 = scalar_select %p304, %s29, 1
          %s306 = scalar_lea.vmem %s5, %s305
        $region40: #{tpu_custom_call.1} parent=23 // pred_fallthru
          _
      $region24: #{tpu_custom_call.1} parent=5 // pred_fallthru
        _
      %p307 = scmp.le.s32.totalorder 1, %s22
      %p308 = scmp.lt.s32.totalorder %s22, 9
      %p309 = pnand %p307, %p308
      %p310 = pneg %p309
      // Predicated region
      $region41: #{tpu_custom_call.1} parent=5 // pred_check
        _
      $region42: #{tpu_custom_call.1} parent=5 // pred_check_branch
        %312 = sbr.rel (%p309) target = $region44
      $region43: #{tpu_custom_call.1} parent=5 // pred_region
        %s313 = ssub.s32 %s22, 1
        %s314 = sand.u32 %s47, 1
        %s315 = scalar_lea.sflag [#allocation3], %s314
        %s316 = sand.u32 %s47, 1
        %s317 = smul.addr %s316, 64
        %s318 = scalar_lea.vmem [#allocation2], %s317
        // Predicated region
        $region45: #{tpu_custom_call.1} parent=43 // pred_check
          %p319 = pneg %p60
        $region46: #{tpu_custom_call.1} parent=43 // pred_check_branch
          %321 = sbr.rel (%p319) target = $region48
        $region47: #{tpu_custom_call.1} parent=43 // pred_region
          %322 = dma.done %s315, 1024
        $region48: #{tpu_custom_call.1} parent=43 // pred_fallthru
          _
        %s323 = sand.u32 %s27, 1
        %s324 = scalar_lea.sflag [#allocation6], %s323
        %s325 = sand.u32 %s73, 1
        %s326 = smul.addr %s325, 64
        %s327 = scalar_lea.vmem [#allocation5], %s326
        // Predicated region
        $region49: #{tpu_custom_call.1} parent=43 // pred_check
          %p328 = pneg %p86
        $region50: #{tpu_custom_call.1} parent=43 // pred_check_branch
          %330 = sbr.rel (%p328) target = $region52
        $region51: #{tpu_custom_call.1} parent=43 // pred_region
          %331 = dma.done %s324, 1024
        $region52: #{tpu_custom_call.1} parent=43 // pred_fallthru
          _
        // Predicated region
        $region53: #{tpu_custom_call.1} parent=43 // pred_check
          %p332 = pneg %p133
        $region54: #{tpu_custom_call.1} parent=43 // pred_check_branch
          %334 = sbr.rel (%p332) target = $region56
        $region55: #{tpu_custom_call.1} parent=43 // pred_region
          %335 = dma.done [#allocation6], 2048
        $region56: #{tpu_custom_call.1} parent=43 // pred_fallthru
          _
        // Predicated region
        $region57: #{tpu_custom_call.1} parent=43 // pred_check
          %p336 = pneg %p154
        $region58: #{tpu_custom_call.1} parent=43 // pred_check_branch
          %338 = sbr.rel (%p336) target = $region60
        $region59: #{tpu_custom_call.1} parent=43 // pred_region
          %339 = dma.done [#allocation9], 2048
        $region60: #{tpu_custom_call.1} parent=43 // pred_fallthru
          _
        %s340 = sand.u32 %s47, 1
        %s341 = scalar_lea.sflag [#allocation3], %s340
        %s342 = sand.u32 %s47, 1
        %s343 = smul.addr %s342, 64
        %s344 = scalar_lea.vmem [#allocation2], %s343
        %p345 = pneg %p60
        %p346 = pneg %p57
        %s347 = sand.u32 %s27, 1
        %s348 = scalar_lea.sflag [#allocation6], %s347
        %s349 = sand.u32 %s73, 1
        %s350 = smul.addr %s349, 64
        %s351 = scalar_lea.vmem [#allocation5], %s350
        %p352 = pneg %p86
        %p353 = pneg %p83
        %p354 = scmp.lt.s32.totalorder %s32, 3
        %s355 = scalar_select %p354, %s32, 3
        %s356 = scalar_lea.vmem %s2, %s355
        %p357 = pneg %p112
        %p358 = pneg %p109
        %p359 = pneg %p133
        %p360 = pneg %p130
        %p361 = pneg %p154
        %p362 = pneg %p151
        %p363 = scmp.lt.s32.totalorder %s31, 1
        %s364 = scalar_select %p363, %s31, 1
        %s365 = scalar_lea.vmem %s5, %s364
        %p366 = pneg %p180
        %p367 = pneg %p177
        %p368 = pneg %p208
        %p369 = pneg %p205
        %s370 = sand.u32 %s195, 1
        %s371 = scalar_lea.sflag [#allocation4], %s370
        %s372 = sand.u32 %s195, 1
        %s373 = smul.addr %s372, 128
        %s374 = scalar_lea.vmem [#allocation10], %s373
        %p375 = scmp.lt.s32.totalorder %s32, 3
        %s376 = scalar_select %p375, %s32, 3
        %s377 = scalar_lea.vmem %s2, %s376
        %p378 = scmp.lt.s32.totalorder %s31, 1
        %s379 = scalar_select %p378, %s31, 1
        %s380 = scalar_lea.vmem %s5, %s379
        %v382 = vld [vmem:[%s318] sm:$0xf]
        %v383 = vld [vmem:[%s318 + $0x4] sm:$0xf]
        %v384 = vld [vmem:[%s318 + $0x8] sm:$0xf]
        %v385 = vld [vmem:[%s318 + $0xc] sm:$0xf]
        %v386 = vld [vmem:[%s318 + $0x10] sm:$0xf]
        %v387 = vld [vmem:[%s318 + $0x14] sm:$0xf]
        %v388 = vld [vmem:[%s318 + $0x18] sm:$0xf]
        %v389 = vld [vmem:[%s318 + $0x1c] sm:$0xf]
        %v390 = vld [vmem:[%s318 + $0x20] sm:$0xf]
        %v391 = vld [vmem:[%s318 + $0x24] sm:$0xf]
        %v392 = vld [vmem:[%s318 + $0x28] sm:$0xf]
        %v393 = vld [vmem:[%s318 + $0x2c] sm:$0xf]
        %v394 = vld [vmem:[%s318 + $0x30] sm:$0xf]
        %v395 = vld [vmem:[%s318 + $0x34] sm:$0xf]
        %v396 = vld [vmem:[%s318 + $0x38] sm:$0xf]
        %v397 = vld [vmem:[%s318 + $0x3c] sm:$0xf]
        %v398 = vld [vmem:[%s327] sm:$0xf]
        %v399 = vld [vmem:[%s327 + $0x4] sm:$0xf]
        %v400 = vld [vmem:[%s327 + $0x8] sm:$0xf]
        %v401 = vld [vmem:[%s327 + $0xc] sm:$0xf]
        %v402 = vld [vmem:[%s327 + $0x10] sm:$0xf]
        %v403 = vld [vmem:[%s327 + $0x14] sm:$0xf]
        %v404 = vld [vmem:[%s327 + $0x18] sm:$0xf]
        %v405 = vld [vmem:[%s327 + $0x1c] sm:$0xf]
        %v406 = vld [vmem:[%s327 + $0x20] sm:$0xf]
        %v407 = vld [vmem:[%s327 + $0x24] sm:$0xf]
        %v408 = vld [vmem:[%s327 + $0x28] sm:$0xf]
        %v409 = vld [vmem:[%s327 + $0x2c] sm:$0xf]
        %v410 = vld [vmem:[%s327 + $0x30] sm:$0xf]
        %v411 = vld [vmem:[%s327 + $0x34] sm:$0xf]
        %v412 = vld [vmem:[%s327 + $0x38] sm:$0xf]
        %v413 = vld [vmem:[%s327 + $0x3c] sm:$0xf]
        %v414 = vld [vmem:[%s377] sm:$0x1]
        %v416 = vlaneseq
        %v417 = vshrl.u32 %v416, 7
        %v418 = vsub.s32 0, %v417
        %v419 = vrot.slane %v414, %v418
        %v437 = vunpack.c.l.b16 %v382
        %v438 = vunpack.c.l.b16 %v383
        %v439 = vunpack.c.l.b16 %v384
        %v440 = vunpack.c.l.b16 %v385
        %v441 = vunpack.c.l.b16 %v386
        %v442 = vunpack.c.l.b16 %v387
        %v443 = vunpack.c.l.b16 %v388
        %v444 = vunpack.c.l.b16 %v389
        %v445 = vunpack.c.l.b16 %v390
        %v446 = vunpack.c.l.b16 %v391
        %v447 = vunpack.c.l.b16 %v392
        %v448 = vunpack.c.l.b16 %v393
        %v449 = vunpack.c.l.b16 %v394
        %v450 = vunpack.c.l.b16 %v395
        %v451 = vunpack.c.l.b16 %v396
        %v452 = vunpack.c.l.b16 %v397
        %v453 = vpack.c.b16 %v438, %v437
        %v454 = vpack.c.b16 %v440, %v439
        %v455 = vpack.c.b16 %v442, %v441
        %v456 = vpack.c.b16 %v444, %v443
        %v457 = vpack.c.b16 %v446, %v445
        %v458 = vpack.c.b16 %v448, %v447
        %v459 = vpack.c.b16 %v450, %v449
        %v460 = vpack.c.b16 %v452, %v451
        %v485 = vunpack.c.l.b16 %v398
        %v486 = vunpack.c.l.b16 %v399
        %v487 = vunpack.c.l.b16 %v400
        %v488 = vunpack.c.l.b16 %v401
        %v489 = vunpack.c.l.b16 %v402
        %v490 = vunpack.c.l.b16 %v403
        %v491 = vunpack.c.l.b16 %v404
        %v492 = vunpack.c.l.b16 %v405
        %v493 = vunpack.c.l.b16 %v406
        %v494 = vunpack.c.l.b16 %v407
        %v495 = vunpack.c.l.b16 %v408
        %v496 = vunpack.c.l.b16 %v409
        %v497 = vunpack.c.l.b16 %v410
        %v498 = vunpack.c.l.b16 %v411
        %v499 = vunpack.c.l.b16 %v412
        %v500 = vunpack.c.l.b16 %v413
        %v501 = vpack.c.b16 %v486, %v485
        %v502 = vpack.c.b16 %v488, %v487
        %v503 = vpack.c.b16 %v490, %v489
        %v504 = vpack.c.b16 %v492, %v491
        %v505 = vpack.c.b16 %v494, %v493
        %v506 = vpack.c.b16 %v496, %v495
        %v507 = vpack.c.b16 %v498, %v497
        %v508 = vpack.c.b16 %v500, %v499
        %517 = vmatprep.subr.bf16.mxu0 0
        %518 = vmatpush1.bf16.msra.mxu0 %v501
        %519 = vmatprep.subr.bf16.mxu0 0
        %520 = vmatpush1.bf16.msra.mxu0 %v502
        %521 = vmatprep.subr.bf16.mxu0 0
        %522 = vmatpush1.bf16.msra.mxu0 %v503
        %523 = vmatprep.subr.bf16.mxu0 0
        %524 = vmatpush1.bf16.msra.mxu0 %v504
        %525 = vmatprep.subr.bf16.mxu0 0
        %526 = vmatpush1.bf16.msra.mxu0 %v505
        %527 = vmatprep.subr.bf16.mxu0 0
        %528 = vmatpush1.bf16.msra.mxu0 %v506
        %529 = vmatprep.subr.bf16.mxu0 0
        %530 = vmatpush1.bf16.msra.mxu0 %v507
        %531 = vmatprep.subr.bf16.mxu0 0
        %532 = vmatpush1.bf16.msra.mxu0 %v508
        %533 = vmatprep.subr.bf16.mxu0 0
        %534 = vmatpush1.bf16.msra.mxu0 0
        %535 = vmatprep.subr.bf16.mxu0 0
        %536 = vmatpush1.bf16.msra.mxu0 0
        %537 = vmatprep.subr.bf16.mxu0 0
        %538 = vmatpush1.bf16.msra.mxu0 0
        %539 = vmatprep.subr.bf16.mxu0 0
        %540 = vmatpush1.bf16.msra.mxu0 0
        %541 = vmatprep.subr.bf16.mxu0 0
        %542 = vmatpush1.bf16.msra.mxu0 0
        %543 = vmatprep.subr.bf16.mxu0 0
        %544 = vmatpush1.bf16.msra.mxu0 0
        %545 = vmatprep.subr.bf16.mxu0 0
        %546 = vmatpush1.bf16.msra.mxu0 0
        %547 = vmatprep.subr.bf16.mxu0 0
        %548 = vmatpush1.bf16.msra.mxu0 0
        %549 = vmatprep.mubr.bf16.mxu0 0
        %550 = vmatmul.mubr.bf16.gmra.mrb[0].mxu0 %v453
        %v551 = vpop.f32.mrb[0].mxu0
        %v552 = vadd.f32 %v419, %v551
        %v553 = vpop.f32.mrb[0].mxu0
        %v554 = vpop.f32.mrb[0].mxu0
        %v555 = vadd.f32 %v419, %v554
        %v556 = vpop.f32.mrb[0].mxu0
        %557 = vmatprep.mubr.bf16.mxu0 0
        %558 = vmatmul.mubr.bf16.gmra.mrb[0].mxu0 %v454
        %v559 = vpop.f32.mrb[0].mxu0
        %v560 = vadd.f32 %v419, %v559
        %v561 = vpop.f32.mrb[0].mxu0
        %v562 = vpop.f32.mrb[0].mxu0
        %v563 = vadd.f32 %v419, %v562
        %v564 = vpop.f32.mrb[0].mxu0
        %565 = vmatprep.mubr.bf16.mxu0 0
        %566 = vmatmul.mubr.bf16.gmra.mrb[0].mxu0 %v455
        %v567 = vpop.f32.mrb[0].mxu0
        %v568 = vadd.f32 %v419, %v567
        %v569 = vpop.f32.mrb[0].mxu0
        %v570 = vpop.f32.mrb[0].mxu0
        %v571 = vadd.f32 %v419, %v570
        %v572 = vpop.f32.mrb[0].mxu0
        %573 = vmatprep.mubr.bf16.mxu0 0
        %574 = vmatmul.mubr.bf16.gmra.mrb[0].mxu0 %v456
        %v575 = vpop.f32.mrb[0].mxu0
        %v576 = vadd.f32 %v419, %v575
        %v577 = vpop.f32.mrb[0].mxu0
        %v578 = vpop.f32.mrb[0].mxu0
        %v579 = vadd.f32 %v419, %v578
        %v580 = vpop.f32.mrb[0].mxu0
        %581 = vmatprep.mubr.bf16.mxu0 0
        %582 = vmatmul.mubr.bf16.gmra.mrb[0].mxu0 %v457
        %v583 = vpop.f32.mrb[0].mxu0
        %v584 = vadd.f32 %v419, %v583
        %v585 = vpop.f32.mrb[0].mxu0
        %v586 = vpop.f32.mrb[0].mxu0
        %v587 = vadd.f32 %v419, %v586
        %v588 = vpop.f32.mrb[0].mxu0
        %589 = vmatprep.mubr.bf16.mxu0 0
        %590 = vmatmul.mubr.bf16.gmra.mrb[0].mxu0 %v458
        %v591 = vpop.f32.mrb[0].mxu0
        %v592 = vadd.f32 %v419, %v591
        %v593 = vpop.f32.mrb[0].mxu0
        %v594 = vpop.f32.mrb[0].mxu0
        %v595 = vadd.f32 %v419, %v594
        %v596 = vpop.f32.mrb[0].mxu0
        %597 = vmatprep.mubr.bf16.mxu0 0
        %598 = vmatmul.mubr.bf16.gmra.mrb[0].mxu0 %v459
        %v599 = vpop.f32.mrb[0].mxu0
        %v600 = vadd.f32 %v419, %v599
        %v601 = vpop.f32.mrb[0].mxu0
        %v602 = vpop.f32.mrb[0].mxu0
        %v603 = vadd.f32 %v419, %v602
        %v604 = vpop.f32.mrb[0].mxu0
        %605 = vmatprep.mubr.bf16.mxu0 0
        %606 = vmatmul.mubr.bf16.gmra.mrb[0].mxu0 %v460
        %v607 = vpop.f32.mrb[0].mxu0
        %v608 = vadd.f32 %v419, %v607
        %v609 = vpop.f32.mrb[0].mxu0
        %v610 = vpop.f32.mrb[0].mxu0
        %v611 = vadd.f32 %v419, %v610
        %v612 = vpop.f32.mrb[0].mxu0
        %613 = vdwg.mxu0
        %v614 = vlaneseq
        %v615 = vand.u32 %v614, 127
        %616 = vrot.lane.b32.xlu0 %v552, 127
        %v617 = vpop.permute.xlu0 %616
        %618 = vrot.lane.b32.xlu0 %v555, 127
        %v619 = vpop.permute.xlu0 %618
        %620 = vrot.lane.b32.xlu0 %v560, 127
        %v621 = vpop.permute.xlu0 %620
        %622 = vrot.lane.b32.xlu0 %v563, 127
        %v623 = vpop.permute.xlu0 %622
        %624 = vrot.lane.b32.xlu0 %v568, 127
        %v625 = vpop.permute.xlu0 %624
        %626 = vrot.lane.b32.xlu0 %v571, 127
        %v627 = vpop.permute.xlu0 %626
        %628 = vrot.lane.b32.xlu0 %v576, 127
        %v629 = vpop.permute.xlu0 %628
        %630 = vrot.lane.b32.xlu0 %v579, 127
        %v631 = vpop.permute.xlu0 %630
        %632 = vrot.lane.b32.xlu0 %v584, 127
        %v633 = vpop.permute.xlu0 %632
        %634 = vrot.lane.b32.xlu0 %v587, 127
        %v635 = vpop.permute.xlu0 %634
        %636 = vrot.lane.b32.xlu0 %v592, 127
        %v637 = vpop.permute.xlu0 %636
        %638 = vrot.lane.b32.xlu0 %v595, 127
        %v639 = vpop.permute.xlu0 %638
        %640 = vrot.lane.b32.xlu0 %v600, 127
        %v641 = vpop.permute.xlu0 %640
        %642 = vrot.lane.b32.xlu0 %v603, 127
        %v643 = vpop.permute.xlu0 %642
        %644 = vrot.lane.b32.xlu0 %v608, 127
        %v645 = vpop.permute.xlu0 %644
        %646 = vrot.lane.b32.xlu0 %v611, 127
        %v647 = vpop.permute.xlu0 %646
        %648 = vrot.lane.b32.xlu0 %v552, 1
        %v649 = vpop.permute.xlu0 %648
        %650 = vrot.lane.b32.xlu0 %v555, 1
        %v651 = vpop.permute.xlu0 %650
        %652 = vrot.lane.b32.xlu0 %v560, 1
        %v653 = vpop.permute.xlu0 %652
        %654 = vrot.lane.b32.xlu0 %v563, 1
        %v655 = vpop.permute.xlu0 %654
        %656 = vrot.lane.b32.xlu0 %v568, 1
        %v657 = vpop.permute.xlu0 %656
        %658 = vrot.lane.b32.xlu0 %v571, 1
        %v659 = vpop.permute.xlu0 %658
        %660 = vrot.lane.b32.xlu0 %v576, 1
        %v661 = vpop.permute.xlu0 %660
        %662 = vrot.lane.b32.xlu0 %v579, 1
        %v663 = vpop.permute.xlu0 %662
        %664 = vrot.lane.b32.xlu0 %v584, 1
        %v665 = vpop.permute.xlu0 %664
        %666 = vrot.lane.b32.xlu0 %v587, 1
        %v667 = vpop.permute.xlu0 %666
        %668 = vrot.lane.b32.xlu0 %v592, 1
        %v669 = vpop.permute.xlu0 %668
        %670 = vrot.lane.b32.xlu0 %v595, 1
        %v671 = vpop.permute.xlu0 %670
        %672 = vrot.lane.b32.xlu0 %v600, 1
        %v673 = vpop.permute.xlu0 %672
        %674 = vrot.lane.b32.xlu0 %v603, 1
        %v675 = vpop.permute.xlu0 %674
        %676 = vrot.lane.b32.xlu0 %v608, 1
        %v677 = vpop.permute.xlu0 %676
        %678 = vrot.lane.b32.xlu0 %v611, 1
        %v679 = vpop.permute.xlu0 %678
        %v680 = vand.u32 %v615, 1
        %vm681 = vcmp.eq.s32.totalorder %v680, 0
        %v682 = vsub.f32 0.0, %v617
        %v683 = vsub.f32 0.0, %v619
        %v684 = vsub.f32 0.0, %v621
        %v685 = vsub.f32 0.0, %v623
        %v686 = vsub.f32 0.0, %v625
        %v687 = vsub.f32 0.0, %v627
        %v688 = vsub.f32 0.0, %v629
        %v689 = vsub.f32 0.0, %v631
        %v690 = vsub.f32 0.0, %v633
        %v691 = vsub.f32 0.0, %v635
        %v692 = vsub.f32 0.0, %v637
        %v693 = vsub.f32 0.0, %v639
        %v694 = vsub.f32 0.0, %v641
        %v695 = vsub.f32 0.0, %v643
        %v696 = vsub.f32 0.0, %v645
        %v697 = vsub.f32 0.0, %v647
        %v698 = vsel %vm681, %v682, %v649
        %v699 = vsel %vm681, %v683, %v651
        %v700 = vsel %vm681, %v684, %v653
        %v701 = vsel %vm681, %v685, %v655
        %v702 = vsel %vm681, %v686, %v657
        %v703 = vsel %vm681, %v687, %v659
        %v704 = vsel %vm681, %v688, %v661
        %v705 = vsel %vm681, %v689, %v663
        %v706 = vsel %vm681, %v690, %v665
        %v707 = vsel %vm681, %v691, %v667
        %v708 = vsel %vm681, %v692, %v669
        %v709 = vsel %vm681, %v693, %v671
        %v710 = vsel %vm681, %v694, %v673
        %v711 = vsel %vm681, %v695, %v675
        %v712 = vsel %vm681, %v696, %v677
        %v713 = vsel %vm681, %v697, %v679
        %v714 = vld [vmem:[#allocation7] sm:$0xff]
        %v715 = vld [vmem:[#allocation7 + $0x8] sm:$0xff]
        %v716 = vld [vmem:[#allocation7 + $0x10] sm:$0xff]
        %v717 = vld [vmem:[#allocation7 + $0x18] sm:$0xff]
        %v718 = vld [vmem:[#allocation7 + $0x20] sm:$0xff]
        %v719 = vld [vmem:[#allocation7 + $0x28] sm:$0xff]
        %v720 = vld [vmem:[#allocation7 + $0x30] sm:$0xff]
        %v721 = vld [vmem:[#allocation7 + $0x38] sm:$0xff]
        %v722 = vld [vmem:[#allocation7 + $0x40] sm:$0xff]
        %v723 = vld [vmem:[#allocation7 + $0x48] sm:$0xff]
        %v724 = vld [vmem:[#allocation7 + $0x50] sm:$0xff]
        %v725 = vld [vmem:[#allocation7 + $0x58] sm:$0xff]
        %v726 = vld [vmem:[#allocation7 + $0x60] sm:$0xff]
        %v727 = vld [vmem:[#allocation7 + $0x68] sm:$0xff]
        %v728 = vld [vmem:[#allocation7 + $0x70] sm:$0xff]
        %v729 = vld [vmem:[#allocation7 + $0x78] sm:$0xff]
        %v730 = vmul.f32 %v552, %v714
        %v731 = vmul.f32 %v555, %v715
        %v732 = vmul.f32 %v560, %v716
        %v733 = vmul.f32 %v563, %v717
        %v734 = vmul.f32 %v568, %v718
        %v735 = vmul.f32 %v571, %v719
        %v736 = vmul.f32 %v576, %v720
        %v737 = vmul.f32 %v579, %v721
        %v738 = vmul.f32 %v584, %v722
        %v739 = vmul.f32 %v587, %v723
        %v740 = vmul.f32 %v592, %v724
        %v741 = vmul.f32 %v595, %v725
        %v742 = vmul.f32 %v600, %v726
        %v743 = vmul.f32 %v603, %v727
        %v744 = vmul.f32 %v608, %v728
        %v745 = vmul.f32 %v611, %v729
        %v746 = vld [vmem:[#allocation8] sm:$0xff]
        %v747 = vld [vmem:[#allocation8 + $0x8] sm:$0xff]
        %v748 = vld [vmem:[#allocation8 + $0x10] sm:$0xff]
        %v749 = vld [vmem:[#allocation8 + $0x18] sm:$0xff]
        %v750 = vld [vmem:[#allocation8 + $0x20] sm:$0xff]
        %v751 = vld [vmem:[#allocation8 + $0x28] sm:$0xff]
        %v752 = vld [vmem:[#allocation8 + $0x30] sm:$0xff]
        %v753 = vld [vmem:[#allocation8 + $0x38] sm:$0xff]
        %v754 = vld [vmem:[#allocation8 + $0x40] sm:$0xff]
        %v755 = vld [vmem:[#allocation8 + $0x48] sm:$0xff]
        %v756 = vld [vmem:[#allocation8 + $0x50] sm:$0xff]
        %v757 = vld [vmem:[#allocation8 + $0x58] sm:$0xff]
        %v758 = vld [vmem:[#allocation8 + $0x60] sm:$0xff]
        %v759 = vld [vmem:[#allocation8 + $0x68] sm:$0xff]
        %v760 = vld [vmem:[#allocation8 + $0x70] sm:$0xff]
        %v761 = vld [vmem:[#allocation8 + $0x78] sm:$0xff]
        %v762 = vmul.f32 %v698, %v746
        %v763 = vmul.f32 %v699, %v747
        %v764 = vmul.f32 %v700, %v748
        %v765 = vmul.f32 %v701, %v749
        %v766 = vmul.f32 %v702, %v750
        %v767 = vmul.f32 %v703, %v751
        %v768 = vmul.f32 %v704, %v752
        %v769 = vmul.f32 %v705, %v753
        %v770 = vmul.f32 %v706, %v754
        %v771 = vmul.f32 %v707, %v755
        %v772 = vmul.f32 %v708, %v756
        %v773 = vmul.f32 %v709, %v757
        %v774 = vmul.f32 %v710, %v758
        %v775 = vmul.f32 %v711, %v759
        %v776 = vmul.f32 %v712, %v760
        %v777 = vmul.f32 %v713, %v761
        %v778 = vadd.f32 %v730, %v762
        %v779 = vadd.f32 %v731, %v763
        %v780 = vadd.f32 %v732, %v764
        %v781 = vadd.f32 %v733, %v765
        %v782 = vadd.f32 %v734, %v766
        %v783 = vadd.f32 %v735, %v767
        %v784 = vadd.f32 %v736, %v768
        %v785 = vadd.f32 %v737, %v769
        %v786 = vadd.f32 %v738, %v770
        %v787 = vadd.f32 %v739, %v771
        %v788 = vadd.f32 %v740, %v772
        %v789 = vadd.f32 %v741, %v773
        %v790 = vadd.f32 %v742, %v774
        %v791 = vadd.f32 %v743, %v775
        %v792 = vadd.f32 %v744, %v776
        %v793 = vadd.f32 %v745, %v777
        %v794 = vpack.c.bf16 %v779, %v778
        %v795 = vpack.c.bf16 %v781, %v780
        %v796 = vpack.c.bf16 %v783, %v782
        %v797 = vpack.c.bf16 %v785, %v784
        %v798 = vpack.c.bf16 %v787, %v786
        %v799 = vpack.c.bf16 %v789, %v788
        %v800 = vpack.c.bf16 %v791, %v790
        %v801 = vpack.c.bf16 %v793, %v792
        %810 = vrot.lane.b32.xlu0 %v794, 64
        %v811 = vpop.permute.xlu0 %810
        %812 = vrot.lane.b32.xlu0 %v795, 64
        %v813 = vpop.permute.xlu0 %812
        %814 = vrot.lane.b32.xlu0 %v796, 64
        %v815 = vpop.permute.xlu0 %814
        %816 = vrot.lane.b32.xlu0 %v797, 64
        %v817 = vpop.permute.xlu0 %816
        %818 = vrot.lane.b32.xlu0 %v798, 64
        %v819 = vpop.permute.xlu0 %818
        %820 = vrot.lane.b32.xlu0 %v799, 64
        %v821 = vpop.permute.xlu0 %820
        %822 = vrot.lane.b32.xlu0 %v800, 64
        %v823 = vpop.permute.xlu0 %822
        %824 = vrot.lane.b32.xlu0 %v801, 64
        %v825 = vpop.permute.xlu0 %824
        %vm826 = vcmask 523264
        %v828 = vsel %vm826, %v794, 0
        %v831 = vsel %vm826, %v795, 0
        %v834 = vsel %vm826, %v796, 0
        %v837 = vsel %vm826, %v797, 0
        %v840 = vsel %vm826, %v798, 0
        %v843 = vsel %vm826, %v799, 0
        %v846 = vsel %vm826, %v800, 0
        %v849 = vsel %vm826, %v801, 0
        %v852 = vsel %vm826, %v811, 0
        %v855 = vsel %vm826, %v813, 0
        %v858 = vsel %vm826, %v815, 0
        %v861 = vsel %vm826, %v817, 0
        %v864 = vsel %vm826, %v819, 0
        %v867 = vsel %vm826, %v821, 0
        %v870 = vsel %vm826, %v823, 0
        %v873 = vsel %vm826, %v825, 0
        %875 = vmatprep.subr.bf16.mxu0 0
        %876 = vmatpush1.bf16.xpose.msra.mxu0 %v852
        %877 = vmatprep.subr.bf16.mxu0 0
        %878 = vmatpush1.bf16.xpose.msra.mxu0 %v855
        %879 = vmatprep.subr.bf16.mxu0 0
        %880 = vmatpush1.bf16.xpose.msra.mxu0 %v858
        %881 = vmatprep.subr.bf16.mxu0 0
        %882 = vmatpush1.bf16.xpose.msra.mxu0 %v861
        %883 = vmatprep.subr.bf16.mxu0 0
        %884 = vmatpush1.bf16.xpose.msra.mxu0 %v864
        %885 = vmatprep.subr.bf16.mxu0 0
        %886 = vmatpush1.bf16.xpose.msra.mxu0 %v867
        %887 = vmatprep.subr.bf16.mxu0 0
        %888 = vmatpush1.bf16.xpose.msra.mxu0 %v870
        %889 = vmatprep.subr.bf16.mxu0 0
        %890 = vmatpush1.bf16.xpose.msra.mxu0 %v873
        %891 = vmatprep.subr.bf16.mxu0 0
        %892 = vmatpush1.bf16.xpose.msra.mxu0 0
        %893 = vmatprep.subr.bf16.mxu0 0
        %894 = vmatpush1.bf16.xpose.msra.mxu0 0
        %895 = vmatprep.subr.bf16.mxu0 0
        %896 = vmatpush1.bf16.xpose.msra.mxu0 0
        %897 = vmatprep.subr.bf16.mxu0 0
        %898 = vmatpush1.bf16.xpose.msra.mxu0 0
        %899 = vmatprep.subr.bf16.mxu0 0
        %900 = vmatpush1.bf16.xpose.msra.mxu0 0
        %901 = vmatprep.subr.bf16.mxu0 0
        %902 = vmatpush1.bf16.xpose.msra.mxu0 0
        %903 = vmatprep.subr.bf16.mxu0 0
        %904 = vmatpush1.bf16.xpose.msra.mxu0 0
        %905 = vmatprep.subr.bf16.mxu0 0
        %906 = vmatpush1.bf16.xpose.msra.mxu0 0
        %907 = vmatprep.mubr.bf16.mxu0 0
        %908 = vmatmul.mubr.bf16.gmra.mrb[0].mxu0 %v828
        %v909 = vpop.f32.mrb[0].mxu0
        %v910 = vadd.f32 0.0, %v909
        %v911 = vpop.f32.mrb[0].mxu0
        %v912 = vpop.f32.mrb[0].mxu0
        %v913 = vadd.f32 0.0, %v912
        %v914 = vpop.f32.mrb[0].mxu0
        %915 = vmatprep.mubr.bf16.mxu0 0
        %916 = vmatmul.mubr.bf16.gmra.mrb[0].mxu0 %v831
        %v917 = vpop.f32.mrb[0].mxu0
        %v918 = vadd.f32 0.0, %v917
        %v919 = vpop.f32.mrb[0].mxu0
        %v920 = vpop.f32.mrb[0].mxu0
        %v921 = vadd.f32 0.0, %v920
        %v922 = vpop.f32.mrb[0].mxu0
        %923 = vmatprep.mubr.bf16.mxu0 0
        %924 = vmatmul.mubr.bf16.gmra.mrb[0].mxu0 %v834
        %v925 = vpop.f32.mrb[0].mxu0
        %v926 = vadd.f32 0.0, %v925
        %v927 = vpop.f32.mrb[0].mxu0
        %v928 = vpop.f32.mrb[0].mxu0
        %v929 = vadd.f32 0.0, %v928
        %v930 = vpop.f32.mrb[0].mxu0
        %931 = vmatprep.mubr.bf16.mxu0 0
        %932 = vmatmul.mubr.bf16.gmra.mrb[0].mxu0 %v837
        %v933 = vpop.f32.mrb[0].mxu0
        %v934 = vadd.f32 0.0, %v933
        %v935 = vpop.f32.mrb[0].mxu0
        %v936 = vpop.f32.mrb[0].mxu0
        %v937 = vadd.f32 0.0, %v936
        %v938 = vpop.f32.mrb[0].mxu0
        %939 = vmatprep.mubr.bf16.mxu0 0
        %940 = vmatmul.mubr.bf16.gmra.mrb[0].mxu0 %v840
        %v941 = vpop.f32.mrb[0].mxu0
        %v942 = vadd.f32 0.0, %v941
        %v943 = vpop.f32.mrb[0].mxu0
        %v944 = vpop.f32.mrb[0].mxu0
        %v945 = vadd.f32 0.0, %v944
        %v946 = vpop.f32.mrb[0].mxu0
        %947 = vmatprep.mubr.bf16.mxu0 0
        %948 = vmatmul.mubr.bf16.gmra.mrb[0].mxu0 %v843
        %v949 = vpop.f32.mrb[0].mxu0
        %v950 = vadd.f32 0.0, %v949
        %v951 = vpop.f32.mrb[0].mxu0
        %v952 = vpop.f32.mrb[0].mxu0
        %v953 = vadd.f32 0.0, %v952
        %v954 = vpop.f32.mrb[0].mxu0
        %955 = vmatprep.mubr.bf16.mxu0 0
        %956 = vmatmul.mubr.bf16.gmra.mrb[0].mxu0 %v846
        %v957 = vpop.f32.mrb[0].mxu0
        %v958 = vadd.f32 0.0, %v957
        %v959 = vpop.f32.mrb[0].mxu0
        %v960 = vpop.f32.mrb[0].mxu0
        %v961 = vadd.f32 0.0, %v960
        %v962 = vpop.f32.mrb[0].mxu0
        %963 = vmatprep.mubr.bf16.mxu0 0
        %964 = vmatmul.mubr.bf16.gmra.mrb[0].mxu0 %v849
        %v965 = vpop.f32.mrb[0].mxu0
        %v966 = vadd.f32 0.0, %v965
        %v967 = vpop.f32.mrb[0].mxu0
        %v968 = vpop.f32.mrb[0].mxu0
        %v969 = vadd.f32 0.0, %v968
        %v970 = vpop.f32.mrb[0].mxu0
        %971 = vdwg.mxu0
        %v972 = vld [vmem:[%s380] sm:$0x1]
        %v973 = vlaneseq
        %v974 = vshrl.u32 %v973, 7
        %v975 = vadd.s32 %v974, 8
        %v976 = vadd.s32 %v974, 16
        %v977 = vadd.s32 %v974, 24
        %v978 = vadd.s32 %v974, 32
        %v979 = vadd.s32 %v974, 40
        %v980 = vadd.s32 %v974, 48
        %v981 = vadd.s32 %v974, 56
        %v982 = vadd.s32 %v974, 64
        %v983 = vadd.s32 %v974, 72
        %v984 = vadd.s32 %v974, 80
        %v985 = vadd.s32 %v974, 88
        %v986 = vadd.s32 %v974, 96
        %v987 = vadd.s32 %v974, 104
        %v988 = vadd.s32 %v974, 112
        %v989 = vadd.s32 %v974, 120
        %vm990 = vcmp.gt.s32.totalorder %v974, %v615
        %vm991 = vcmp.gt.s32.totalorder %v975, %v615
        %vm992 = vcmp.gt.s32.totalorder %v976, %v615
        %vm993 = vcmp.gt.s32.totalorder %v977, %v615
        %vm994 = vcmp.gt.s32.totalorder %v978, %v615
        %vm995 = vcmp.gt.s32.totalorder %v979, %v615
        %vm996 = vcmp.gt.s32.totalorder %v980, %v615
        %vm997 = vcmp.gt.s32.totalorder %v981, %v615
        %vm998 = vcmp.gt.s32.totalorder %v982, %v615
        %vm999 = vcmp.gt.s32.totalorder %v983, %v615
        %vm1000 = vcmp.gt.s32.totalorder %v984, %v615
        %vm1001 = vcmp.gt.s32.totalorder %v985, %v615
        %vm1002 = vcmp.gt.s32.totalorder %v986, %v615
        %vm1003 = vcmp.gt.s32.totalorder %v987, %v615
        %vm1004 = vcmp.gt.s32.totalorder %v988, %v615
        %vm1005 = vcmp.gt.s32.totalorder %v989, %v615
        %v1006 = vsel %vm990, -1.25e+11, 0.0
        %v1007 = vsel %vm991, -1.25e+11, 0.0
        %v1008 = vsel %vm992, -1.25e+11, 0.0
        %v1009 = vsel %vm993, -1.25e+11, 0.0
        %v1010 = vsel %vm994, -1.25e+11, 0.0
        %v1011 = vsel %vm995, -1.25e+11, 0.0
        %v1012 = vsel %vm996, -1.25e+11, 0.0
        %v1013 = vsel %vm997, -1.25e+11, 0.0
        %v1014 = vsel %vm998, -1.25e+11, 0.0
        %v1015 = vsel %vm999, -1.25e+11, 0.0
        %v1016 = vsel %vm1000, -1.25e+11, 0.0
        %v1017 = vsel %vm1001, -1.25e+11, 0.0
        %v1018 = vsel %vm1002, -1.25e+11, 0.0
        %v1019 = vsel %vm1003, -1.25e+11, 0.0
        %v1020 = vsel %vm1004, -1.25e+11, 0.0
        %v1021 = vsel %vm1005, -1.25e+11, 0.0
        %v1022 = vsub.f32 1.0, %v972
        %v1023 = vmul.f32 %v1022, -1.25e+11
        %v1025 = vlaneseq
        %v1026 = vshrl.u32 %v1025, 7
        %v1027 = vsub.s32 0, %v1026
        %v1028 = vrot.slane %v1023, %v1027
        %v1030 = vadd.f32 %v1006, %v1028
        %v1031 = vadd.f32 %v1007, %v1028
        %v1032 = vadd.f32 %v1008, %v1028
        %v1033 = vadd.f32 %v1009, %v1028
        %v1034 = vadd.f32 %v1010, %v1028
        %v1035 = vadd.f32 %v1011, %v1028
        %v1036 = vadd.f32 %v1012, %v1028
        %v1037 = vadd.f32 %v1013, %v1028
        %v1038 = vadd.f32 %v1014, %v1028
        %v1039 = vadd.f32 %v1015, %v1028
        %v1040 = vadd.f32 %v1016, %v1028
        %v1041 = vadd.f32 %v1017, %v1028
        %v1042 = vadd.f32 %v1018, %v1028
        %v1043 = vadd.f32 %v1019, %v1028
        %v1044 = vadd.f32 %v1020, %v1028
        %v1045 = vadd.f32 %v1021, %v1028
        %v1047 = vlaneseq
        %v1048 = vshrl.u32 %v1047, 7
        %v1049 = vsub.s32 0, %v1048
        %v1050 = vrot.slane %v972, %v1049
        %v1052 = vmul.f32 %v910, %v1050
        %v1053 = vmul.f32 %v913, %v1050
        %v1054 = vmul.f32 %v918, %v1050
        %v1055 = vmul.f32 %v921, %v1050
        %v1056 = vmul.f32 %v926, %v1050
        %v1057 = vmul.f32 %v929, %v1050
        %v1058 = vmul.f32 %v934, %v1050
        %v1059 = vmul.f32 %v937, %v1050
        %v1060 = vmul.f32 %v942, %v1050
        %v1061 = vmul.f32 %v945, %v1050
        %v1062 = vmul.f32 %v950, %v1050
        %v1063 = vmul.f32 %v953, %v1050
        %v1064 = vmul.f32 %v958, %v1050
        %v1065 = vmul.f32 %v961, %v1050
        %v1066 = vmul.f32 %v966, %v1050
        %v1067 = vmul.f32 %v969, %v1050
        %v1068 = vadd.f32 %v1052, %v1030
        %v1069 = vadd.f32 %v1053, %v1031
        %v1070 = vadd.f32 %v1054, %v1032
        %v1071 = vadd.f32 %v1055, %v1033
        %v1072 = vadd.f32 %v1056, %v1034
        %v1073 = vadd.f32 %v1057, %v1035
        %v1074 = vadd.f32 %v1058, %v1036
        %v1075 = vadd.f32 %v1059, %v1037
        %v1076 = vadd.f32 %v1060, %v1038
        %v1077 = vadd.f32 %v1061, %v1039
        %v1078 = vadd.f32 %v1062, %v1040
        %v1079 = vadd.f32 %v1063, %v1041
        %v1080 = vadd.f32 %v1064, %v1042
        %v1081 = vadd.f32 %v1065, %v1043
        %v1082 = vadd.f32 %v1066, %v1044
        %v1083 = vadd.f32 %v1067, %v1045
        %1084 = vst [vmem:[%s374] sm:$0xff] %v1068
        %1085 = vst [vmem:[%s374 + $0x8] sm:$0xff] %v1069
        %1086 = vst [vmem:[%s374 + $0x10] sm:$0xff] %v1070
        %1087 = vst [vmem:[%s374 + $0x18] sm:$0xff] %v1071
        %1088 = vst [vmem:[%s374 + $0x20] sm:$0xff] %v1072
        %1089 = vst [vmem:[%s374 + $0x28] sm:$0xff] %v1073
        %1090 = vst [vmem:[%s374 + $0x30] sm:$0xff] %v1074
        %1091 = vst [vmem:[%s374 + $0x38] sm:$0xff] %v1075
        %1092 = vst [vmem:[%s374 + $0x40] sm:$0xff] %v1076
        %1093 = vst [vmem:[%s374 + $0x48] sm:$0xff] %v1077
        %1094 = vst [vmem:[%s374 + $0x50] sm:$0xff] %v1078
        %1095 = vst [vmem:[%s374 + $0x58] sm:$0xff] %v1079
        %1096 = vst [vmem:[%s374 + $0x60] sm:$0xff] %v1080
        %1097 = vst [vmem:[%s374 + $0x68] sm:$0xff] %v1081
        %1098 = vst [vmem:[%s374 + $0x70] sm:$0xff] %v1082
        %1099 = vst [vmem:[%s374 + $0x78] sm:$0xff] %v1083
        %s1100 = sand.u32 %s195, 1
        %s1101 = scalar_lea.sflag [#allocation4], %s1100
        %s1102 = sand.u32 %s195, 1
        %s1103 = smul.addr %s1102, 128
        %s1104 = scalar_lea.vmem [#allocation10], %s1103
        // Predicated region
        $region61: #{tpu_custom_call.1} parent=43 // pred_check
          %p1105 = pneg %p205
        $region62: #{tpu_custom_call.1} parent=43 // pred_check_branch
          %1107 = sbr.rel (%p1105) target = $region64
        $region63: #{tpu_custom_call.1} parent=43 // pred_region
          %s1109 = ssub.s32 2048, 2048
          %1110 = vsyncadd %s1101, %s1109
          %s1111 = smul.addr %s32, 16
          %s1112 = smul.addr %s31, 64
          %s1113 = sadd.s32 %s1111, %s1112
          %s1114 = smul.addr %s1113, 128
          %s1115 = scalar_lea.hbm %s6, %s1114
          %s1116 = sshll.u32 %s1104, 4
          %s1117 = int_to_ptr.vmem [resolvable:$true] %s1116
          %1122 = dma.vmem_to_hbm [thread:$0]  %s1117, 2048, %s1115, %s1101, 128, 128, 8
        $region64: #{tpu_custom_call.1} parent=43 // pred_fallthru
          _
      $region44: #{tpu_custom_call.1} parent=5 // pred_fallthru
        _
      %p1123 = scmp.le.s32.totalorder 2, %s22
      // Predicated region
      $region65: #{tpu_custom_call.1} parent=5 // pred_check
        %p1124 = pneg %p1123
      $region66: #{tpu_custom_call.1} parent=5 // pred_check_branch
        %1126 = sbr.rel (%p1124) target = $region68
      $region67: #{tpu_custom_call.1} parent=5 // pred_region
        %s1127 = ssub.s32 %s22, 2
        // Predicated region
        $region69: #{tpu_custom_call.1} parent=67 // pred_check
          %p1128 = pneg %p211
        $region70: #{tpu_custom_call.1} parent=67 // pred_check_branch
          %1130 = sbr.rel (%p1128) target = $region72
        $region71: #{tpu_custom_call.1} parent=67 // pred_region
          %s1131 = sand.u32 %s196, 1
          %s1132 = scalar_lea.sflag [#allocation4], %s1131
          %s1133 = sand.u32 %s196, 1
          %s1134 = smul.addr %s1133, 128
          %s1135 = scalar_lea.vmem [#allocation10], %s1134
          %1136 = dma.done %s1132, 2048
        $region72: #{tpu_custom_call.1} parent=67 // pred_fallthru
          _
      $region68: #{tpu_custom_call.1} parent=5 // pred_fallthru
        _
    $region6: #{tpu_custom_call.1} parent=1 // loop_footer
      %s26 = sadd.s32 1, %s22
    $region7: #{tpu_custom_call.1} parent=1 // loop_footer_branch
      %21 = sbr.rel target = $region3
    $region8: #{tpu_custom_call.1} parent=1 // loop_exit
      _
    %1137 = vsyncpa [#allocation3], 1
    %s1138 = scalar_lea.sflag [#allocation3], 1
    %1139 = vsyncpa %s1138, 1
    %1140 = vsyncpa [#allocation6], 1
    %s1141 = scalar_lea.sflag [#allocation6], 1
    %1142 = vsyncpa %s1141, 1
    %1143 = vsyncpa [#allocation9], 1
    %1144 = vsyncpa [#allocation4], 1
    %s1145 = scalar_lea.sflag [#allocation4], 1
    %1146 = vsyncpa %s1145, 1

</llo_original>
